<compile_context>
chip_gen: v7x
topology: tpu7x:2x2x1
jax: 0.10.0
libtpu: 0.0.40
codegen_flags: <defaults>
</compile_context>

<pallas_src>
import functools

import jax
import jax.numpy as jnp
from jax import lax
from jax.experimental import pallas as pl
from jax.experimental.pallas import tpu as pltpu

EPS = 1e-8


def _round_up(x, m):
    return ((x + m - 1) // m) * m


def _attentive_match_kernel(v1_ref, m1_ref, v2_ref, m2_ref, o_ref, *, matmul_dtype):
    # Blocks: v1 (TB, TM, H), m1 (TB, TM, 1), v2 (TB, TN, H), m2 (TB, TN, 1),
    # out (TB, TM, TN).
    v1m = v1_ref[...] * m1_ref[...]
    v2m = v2_ref[...] * m2_ref[...]

    lhs = v1m if matmul_dtype is None else v1m.astype(matmul_dtype)
    rhs = v2m if matmul_dtype is None else v2m.astype(matmul_dtype)

    # (TB, TM, H) x (TB, TN, H) -> (TB, TM, TN): contraction over the last
    # axis (LHS . RHS^T), no explicit transpose of the RHS tile; f32 MXU accum.
    a = jnp.einsum("bik,bjk->bij", lhs, rhs, preferred_element_type=jnp.float32)

    # Squared L2 norms in f32, combined with a single EUP rsqrt.
    v1f = v1m.astype(jnp.float32)
    v2f = v2m.astype(jnp.float32)
    s1 = jnp.sum(v1f * v1f, axis=-1, keepdims=True)        # (TB, TM, 1)
    s2 = jnp.sum(v2f * v2f, axis=-1, keepdims=True)        # (TB, TN, 1)
    d2 = s1 * jnp.swapaxes(s2, 1, 2)                       # (TB, TM, TN)
    inv_d = lax.rsqrt(jnp.maximum(d2, EPS * EPS))
    o_ref[...] = (a * inv_d).astype(o_ref.dtype)


def attentive_match(v1, v1_mask, v2, v2_mask, *, matmul_dtype=None,
                    vmem_budget_bytes=8 * 1024 * 1024):
    B, L1, H = v1.shape
    _, L2, _ = v2.shape
    in_bytes = jnp.dtype(v1.dtype).itemsize
    out_dtype = jnp.float32

    # --- layout padding ----------------------------------------------------
    L1p = _round_up(L1, 8)       # sublane alignment for v1 rows / output rows
    L2p = _round_up(L2, 128)     # lane-dense output columns

    # --- tile selection ----------------------------------------------------
    TM = min(L1p, 512)
    TN = min(L2p, 512)

    def step_bytes(tb, tm, tn):
        # double-buffered per-step working set (inputs + masks + f32 output)
        per_batch = in_bytes * (tm * H + tn * H + tm + tn) + 4 * tm * tn
        return 2 * tb * per_batch

    # Shrink L1/L2 tiles until a single (double-buffered) step fits the budget.
    while step_bytes(1, TM, TN) > vmem_budget_bytes and (TM > 8 or TN > 128):
        if TM >= TN and TM > 8:
            TM = max(8, _round_up(TM // 2, 8))
        elif TN > 128:
            TN = max(128, _round_up(TN // 2, 128))
        else:
            break

    # Pack batches per step to amortize grid overhead, within the VMEM budget.
    TB = max(1, min(B, vmem_budget_bytes // max(1, step_bytes(1, TM, TN))))
    TB = min(TB, 64)

    L1pp = _round_up(L1p, TM)
    L2pp = _round_up(L2p, TN)
    Bp = _round_up(B, TB)

    def pad3(x, bp, lp):
        b, l, _ = x.shape
        if b == bp and l == lp:
            return x
        return jnp.pad(x, ((0, bp - b), (0, lp - l), (0, 0)))

    v1p = pad3(v1, Bp, L1pp)
    v2p = pad3(v2, Bp, L2pp)
    m1 = pad3(v1_mask.astype(v1.dtype)[..., None], Bp, L1pp)
    m2 = pad3(v2_mask.astype(v2.dtype)[..., None], Bp, L2pp)

    grid = (Bp // TB, L1pp // TM, L2pp // TN)

    kernel = functools.partial(_attentive_match_kernel, matmul_dtype=matmul_dtype)

    flops = 2 * Bp * L1pp * L2pp * H
    bytes_accessed = (
        in_bytes * grid[2] * Bp * L1pp * H      # v1 re-fetched per L2 tile
        + in_bytes * grid[1] * Bp * L2pp * H    # v2 re-fetched per L1 tile
        + in_bytes * (Bp * L1pp + Bp * L2pp)    # masks (approx.)
        + 4 * Bp * L1pp * L2pp                  # output writeback
    )

    out = pl.pallas_call(
        kernel,
        out_shape=jax.ShapeDtypeStruct((Bp, L1pp, L2pp), out_dtype),
        grid_spec=pltpu.PrefetchScalarGridSpec(
            num_scalar_prefetch=0,
            grid=grid,
            in_specs=[
                pl.BlockSpec((TB, TM, H), lambda b, i, j: (b, i, 0)),
                pl.BlockSpec((TB, TM, 1), lambda b, i, j: (b, i, 0)),
                pl.BlockSpec((TB, TN, H), lambda b, i, j: (b, j, 0)),
                pl.BlockSpec((TB, TN, 1), lambda b, i, j: (b, j, 0)),
            ],
            out_specs=pl.BlockSpec((TB, TM, TN), lambda b, i, j: (b, i, j)),
        ),
        compiler_params=pltpu.CompilerParams(
            dimension_semantics=("parallel", "parallel", "parallel"),
            vmem_limit_bytes=32 * 1024 * 1024,
        ),
        cost_estimate=pl.CostEstimate(
            flops=flops,
            transcendentals=Bp * L1pp * L2pp,
            bytes_accessed=bytes_accessed,
        ),
    )(v1p, m1, v2p, m2)

    # Padded rows/cols/batches have zero masks -> zero output; slice them away.
    return out[:B, :L1, :L2]


def _reference(v1, v1_mask, v2, v2_mask):
    v1 = v1 * v1_mask[..., None]
    v2 = v2 * v2_mask[..., None]
    n1 = jnp.linalg.norm(v1, axis=2, keepdims=True)                      # (B, L1, 1)
    n2 = jnp.linalg.norm(v2, axis=2, keepdims=True).transpose(0, 2, 1)   # (B, 1, L2)
    a = jnp.einsum("bik,bjk->bij", v1, v2)
    d = n1 * n2
    d = jnp.where(d > EPS, d, EPS)
    return a / d


if __name__ == "__main__":
    # Small shapes consistent with the module: batch=2, seq lens 8/8, hidden=32.
    B, L1, L2, H = 2, 8, 8, 32
    key = jax.random.PRNGKey(0)
    k1, k2, k3, k4 = jax.random.split(key, 4)

    v1 = jax.random.normal(k1, (B, L1, H), dtype=jnp.float32)
    v2 = jax.random.normal(k2, (B, L2, H), dtype=jnp.float32)
    # binary masks (some padded positions)
    v1_mask = (jax.random.uniform(k3, (B, L1)) > 0.3).astype(jnp.float32)
    v2_mask = (jax.random.uniform(k4, (B, L2)) > 0.3).astype(jnp.float32)

    # f32 matmul for exact module semantics; matmul_dtype=jnp.bfloat16 is an
    # optional throughput mode on v6e/v7x (~1e-3 relative accuracy).
    out = attentive_match(v1, v1_mask, v2, v2_mask)
    out = jax.block_until_ready(out)

    ref = _reference(v1, v1_mask, v2, v2_mask)
    assert out.shape == (B, L1, L2)
    assert jnp.allclose(out, ref, atol=1e-5, rtol=1e-5), "mismatch vs reference"

    print("KERNEL_OK")
</pallas_src>

<mosaic_0001>
module attributes {stable_mosaic.version = 11 : i64} {
  func.func @_attentive_match_kernel(%arg0: i32, %arg1: i32, %arg2: i32, %arg3: memref<2x8x32xf32, #tpu.memory_space<vmem>>, %arg4: memref<2x8x1xf32, #tpu.memory_space<vmem>>, %arg5: memref<2x128x32xf32, #tpu.memory_space<vmem>>, %arg6: memref<2x128x1xf32, #tpu.memory_space<vmem>>, %arg7: memref<2x8x128xf32, #tpu.memory_space<vmem>>) attributes {dimension_semantics = [#tpu.dimension_semantics<parallel>, #tpu.dimension_semantics<parallel>, #tpu.dimension_semantics<parallel>], iteration_bounds = array<i64: 1, 1, 1>, scalar_prefetch = 0 : i64, scratch_operands = 0 : i64, tpu.core_type = #tpu.core_type<tc>, window_params = [{transform_indices = @transform_0, window_bounds = array<i64: 2, 8, 32>}, {transform_indices = @transform_1, window_bounds = array<i64: 2, 8, 1>}, {transform_indices = @transform_2, window_bounds = array<i64: 2, 128, 32>}, {transform_indices = @transform_3, window_bounds = array<i64: 2, 128, 1>}, {transform_indices = @transform_4, window_bounds = array<i64: 2, 8, 128>}]} {
    %c0 = arith.constant 0 : index
    %c0_0 = arith.constant 0 : index
    %c0_1 = arith.constant 0 : index
    %0 = vector.load %arg3[%c0, %c0_0, %c0_1] : memref<2x8x32xf32, #tpu.memory_space<vmem>>, vector<2x8x32xf32>
    %c0_2 = arith.constant 0 : index
    %c0_3 = arith.constant 0 : index
    %c0_4 = arith.constant 0 : index
    %1 = vector.load %arg4[%c0_2, %c0_3, %c0_4] : memref<2x8x1xf32, #tpu.memory_space<vmem>>, vector<2x8x1xf32>
    %2 = vector.broadcast %1 : vector<2x8x1xf32> to vector<2x8x32xf32>
    %3 = arith.mulf %0, %2 : vector<2x8x32xf32>
    %c0_5 = arith.constant 0 : index
    %c0_6 = arith.constant 0 : index
    %c0_7 = arith.constant 0 : index
    %4 = vector.load %arg5[%c0_5, %c0_6, %c0_7] : memref<2x128x32xf32, #tpu.memory_space<vmem>>, vector<2x128x32xf32>
    %c0_8 = arith.constant 0 : index
    %c0_9 = arith.constant 0 : index
    %c0_10 = arith.constant 0 : index
    %5 = vector.load %arg6[%c0_8, %c0_9, %c0_10] : memref<2x128x1xf32, #tpu.memory_space<vmem>>, vector<2x128x1xf32>
    %6 = vector.broadcast %5 : vector<2x128x1xf32> to vector<2x128x32xf32>
    %7 = arith.mulf %4, %6 : vector<2x128x32xf32>
    "tpu.trace_start"() <{level = 10 : i32, message = "bik,bjk->bij"}> : () -> ()
    %cst = arith.constant dense<0.000000e+00> : vector<2x8x128xf32>
    %8 = tpu.matmul %3, %7, %cst {dimension_numbers = #tpu.dot_dimension_numbers<[2], [2], [1], [1], [0, 0, 0, 1, 1, 1], [0], [0]>} : vector<2x8x32xf32>, vector<2x128x32xf32>, vector<2x8x128xf32> -> vector<2x8x128xf32>
    "tpu.trace_stop"() : () -> ()
    %9 = arith.mulf %3, %3 : vector<2x8x32xf32>
    %cst_11 = arith.constant dense<0.000000e+00> : vector<2x8xf32>
    %10 = vector.multi_reduction <add>, %9, %cst_11 [2] : vector<2x8x32xf32> to vector<2x8xf32>
    %11 = vector.shape_cast %10 : vector<2x8xf32> to vector<2x8x1xf32>
    %12 = arith.mulf %7, %7 : vector<2x128x32xf32>
    %cst_12 = arith.constant dense<0.000000e+00> : vector<2x128xf32>
    %13 = vector.multi_reduction <add>, %12, %cst_12 [2] : vector<2x128x32xf32> to vector<2x128xf32>
    %14 = vector.shape_cast %13 : vector<2x128xf32> to vector<2x128x1xf32>
    %15 = tpu.transpose %14, [0, 2, 1] : vector<2x128x1xf32> -> vector<2x1x128xf32>
    %16 = vector.broadcast %11 : vector<2x8x1xf32> to vector<2x8x128xf32>
    %17 = vector.broadcast %15 : vector<2x1x128xf32> to vector<2x8x128xf32>
    %18 = arith.mulf %16, %17 : vector<2x8x128xf32>
    %cst_13 = arith.constant 1.000000e-16 : f32
    %19 = vector.broadcast %cst_13 : f32 to vector<2x8x128xf32>
    %20 = arith.maximumf %18, %19 : vector<2x8x128xf32>
    %21 = math.rsqrt %20 : vector<2x8x128xf32>
    %22 = arith.mulf %8, %21 : vector<2x8x128xf32>
    %c0_14 = arith.constant 0 : index
    %c0_15 = arith.constant 0 : index
    %c0_16 = arith.constant 0 : index
    %23 = vector.load %arg7[%c0_14, %c0_15, %c0_16] : memref<2x8x128xf32, #tpu.memory_space<vmem>>, vector<2x8x128xf32>
    tpu.vector_store %arg7[%c0_14, %c0_15, %c0_16], %22 {strides = array<i32>} : memref<2x8x128xf32, #tpu.memory_space<vmem>>, vector<2x8x128xf32>,
    return
  }
  func.func @transform_0(%arg0: i32, %arg1: i32, %arg2: i32) -> (i32, i32, i32) {
    %c0_i32 = arith.constant 0 : i32
    %c0_i32_0 = arith.constant 0 : i32
    return %arg0, %arg1, %c0_i32 : i32, i32, i32
  }
  func.func @transform_1(%arg0: i32, %arg1: i32, %arg2: i32) -> (i32, i32, i32) {
    %c0_i32 = arith.constant 0 : i32
    %c0_i32_0 = arith.constant 0 : i32
    return %arg0, %arg1, %c0_i32 : i32, i32, i32
  }
  func.func @transform_2(%arg0: i32, %arg1: i32, %arg2: i32) -> (i32, i32, i32) {
    %c0_i32 = arith.constant 0 : i32
    %c0_i32_0 = arith.constant 0 : i32
    return %arg0, %arg2, %c0_i32 : i32, i32, i32
  }
  func.func @transform_3(%arg0: i32, %arg1: i32, %arg2: i32) -> (i32, i32, i32) {
    %c0_i32 = arith.constant 0 : i32
    %c0_i32_0 = arith.constant 0 : i32
    return %arg0, %arg2, %c0_i32 : i32, i32, i32
  }
  func.func @transform_4(%arg0: i32, %arg1: i32, %arg2: i32) -> (i32, i32, i32) {
    %c0_i32 = arith.constant 0 : i32
    return %arg0, %arg1, %arg2 : i32, i32, i32
  }
}

</mosaic_0001>

<llo_original>
// kernel: tpu_custom_call.1
$region0: #{tpu_custom_call.1}
  #allocation0 [shape = 'u32[]', space=smem, size = 0x4, offset = 0x4, fixed_abs, tag = 'smem constant byte address 0x4 - core index']
  #allocation1 [shape = 'u32[144,128]{1,0:T(1,128)}', space=vmem, size = 0x12000, scoped, tag = 'internal scratch']
  %s0 = inlined_call_operand.vmem [shape: f32[2,8,32], index: 0, kind: input, shape index: {}]
  %s1 = inlined_call_operand.vmem [shape: f32[2,8,1], index: 1, kind: input, shape index: {}]
  %s2 = inlined_call_operand.vmem [shape: f32[2,128,32], index: 2, kind: input, shape index: {}]
  %s3 = inlined_call_operand.vmem [shape: f32[2,128,1], index: 3, kind: input, shape index: {}]
  %s4 = inlined_call_operand.hbm [shape: f32[2,8,128], index: 4, kind: output, shape index: {}]
  %s5 = sld [smem:[#allocation0]]
  $region26: #{tpu_custom_call.1} parent=0
    _
  %s7 = ssub.s32 1, %s5
  %s8 = scalar_select 0, %s7, %s5
  $region1: #{tpu_custom_call.1} parent=0
    #allocation2 [shape = 'u8[8192]{0}', space=vmem, size = 0x2000, scoped, tag = 'output window, operand 0, single buffered']
    #allocation3 [shape = 's32[1]{0}', space=sflag, size = 0x4, scoped, tag = 'scoped memory for tpu_custom_call.1']
    %9 = vsyncpa [#allocation3], 0
    // Predicated region
    $region2: #{tpu_custom_call.1} parent=1 // pred_check
      _
    $region3: #{tpu_custom_call.1} parent=1 // pred_check_branch
      %11 = sbr.rel (0) target = $region5
    $region4: #{tpu_custom_call.1} parent=1 // pred_region
      _
    $region5: #{tpu_custom_call.1} parent=1 // pred_fallthru
      _
    // Predicated region
    $region6: #{tpu_custom_call.1} parent=1 // pred_check
      _
    $region7: #{tpu_custom_call.1} parent=1 // pred_check_branch
      %13 = sbr.rel (0) target = $region9
    $region8: #{tpu_custom_call.1} parent=1 // pred_region
      _
    $region9: #{tpu_custom_call.1} parent=1 // pred_fallthru
      _
    // Predicated region
    $region10: #{tpu_custom_call.1} parent=1 // pred_check
      _
    $region11: #{tpu_custom_call.1} parent=1 // pred_check_branch
      %15 = sbr.rel (0) target = $region13
    $region12: #{tpu_custom_call.1} parent=1 // pred_region
      _
    $region13: #{tpu_custom_call.1} parent=1 // pred_fallthru
      _
    // Predicated region
    $region14: #{tpu_custom_call.1} parent=1 // pred_check
      _
    $region15: #{tpu_custom_call.1} parent=1 // pred_check_branch
      %17 = sbr.rel (0) target = $region17
    $region16: #{tpu_custom_call.1} parent=1 // pred_region
      _
    $region17: #{tpu_custom_call.1} parent=1 // pred_fallthru
      _
    %v18 = vld [vmem:[%s0] sm:$0xff]
    %v19 = vld [vmem:[%s0 + $0x8] sm:$0xff]
    %v20 = vld [vmem:[%s1] sm:$0xff]
    %v21 = vld [vmem:[%s1 + $0x8] sm:$0xff]
    %23 = vset.pattern.permute.xlu0 0
    %24 = vperm.xlu0 %23, %v20
    %v25 = vpop.permute.xlu0 %24
    %28 = vset.pattern.permute.xlu0 0
    %29 = vperm.xlu0 %28, %v21
    %v30 = vpop.permute.xlu0 %29
    %v32 = vmul.f32 %v18, %v25
    %v33 = vmul.f32 %v19, %v30
    %v34 = vld [vmem:[%s2] sm:$0xff]
    %v35 = vld [vmem:[%s2 + $0x8] sm:$0xff]
    %v36 = vld [vmem:[%s2 + $0x10] sm:$0xff]
    %v37 = vld [vmem:[%s2 + $0x18] sm:$0xff]
    %v38 = vld [vmem:[%s2 + $0x20] sm:$0xff]
    %v39 = vld [vmem:[%s2 + $0x28] sm:$0xff]
    %v40 = vld [vmem:[%s2 + $0x30] sm:$0xff]
    %v41 = vld [vmem:[%s2 + $0x38] sm:$0xff]
    %v42 = vld [vmem:[%s2 + $0x40] sm:$0xff]
    %v43 = vld [vmem:[%s2 + $0x48] sm:$0xff]
    %v44 = vld [vmem:[%s2 + $0x50] sm:$0xff]
    %v45 = vld [vmem:[%s2 + $0x58] sm:$0xff]
    %v46 = vld [vmem:[%s2 + $0x60] sm:$0xff]
    %v47 = vld [vmem:[%s2 + $0x68] sm:$0xff]
    %v48 = vld [vmem:[%s2 + $0x70] sm:$0xff]
    %v49 = vld [vmem:[%s2 + $0x78] sm:$0xff]
    %v50 = vld [vmem:[%s2 + $0x80] sm:$0xff]
    %v51 = vld [vmem:[%s2 + $0x88] sm:$0xff]
    %v52 = vld [vmem:[%s2 + $0x90] sm:$0xff]
    %v53 = vld [vmem:[%s2 + $0x98] sm:$0xff]
    %v54 = vld [vmem:[%s2 + $0xa0] sm:$0xff]
    %v55 = vld [vmem:[%s2 + $0xa8] sm:$0xff]
    %v56 = vld [vmem:[%s2 + $0xb0] sm:$0xff]
    %v57 = vld [vmem:[%s2 + $0xb8] sm:$0xff]
    %v58 = vld [vmem:[%s2 + $0xc0] sm:$0xff]
    %v59 = vld [vmem:[%s2 + $0xc8] sm:$0xff]
    %v60 = vld [vmem:[%s2 + $0xd0] sm:$0xff]
    %v61 = vld [vmem:[%s2 + $0xd8] sm:$0xff]
    %v62 = vld [vmem:[%s2 + $0xe0] sm:$0xff]
    %v63 = vld [vmem:[%s2 + $0xe8] sm:$0xff]
    %v64 = vld [vmem:[%s2 + $0xf0] sm:$0xff]
    %v65 = vld [vmem:[%s2 + $0xf8] sm:$0xff]
    %v66 = vld [vmem:[%s3] sm:$0xff]
    %v67 = vld [vmem:[%s3 + $0x8] sm:$0xff]
    %v68 = vld [vmem:[%s3 + $0x10] sm:$0xff]
    %v69 = vld [vmem:[%s3 + $0x18] sm:$0xff]
    %v70 = vld [vmem:[%s3 + $0x20] sm:$0xff]
    %v71 = vld [vmem:[%s3 + $0x28] sm:$0xff]
    %v72 = vld [vmem:[%s3 + $0x30] sm:$0xff]
    %v73 = vld [vmem:[%s3 + $0x38] sm:$0xff]
    %v74 = vld [vmem:[%s3 + $0x40] sm:$0xff]
    %v75 = vld [vmem:[%s3 + $0x48] sm:$0xff]
    %v76 = vld [vmem:[%s3 + $0x50] sm:$0xff]
    %v77 = vld [vmem:[%s3 + $0x58] sm:$0xff]
    %v78 = vld [vmem:[%s3 + $0x60] sm:$0xff]
    %v79 = vld [vmem:[%s3 + $0x68] sm:$0xff]
    %v80 = vld [vmem:[%s3 + $0x70] sm:$0xff]
    %v81 = vld [vmem:[%s3 + $0x78] sm:$0xff]
    %v82 = vld [vmem:[%s3 + $0x80] sm:$0xff]
    %v83 = vld [vmem:[%s3 + $0x88] sm:$0xff]
    %v84 = vld [vmem:[%s3 + $0x90] sm:$0xff]
    %v85 = vld [vmem:[%s3 + $0x98] sm:$0xff]
    %v86 = vld [vmem:[%s3 + $0xa0] sm:$0xff]
    %v87 = vld [vmem:[%s3 + $0xa8] sm:$0xff]
    %v88 = vld [vmem:[%s3 + $0xb0] sm:$0xff]
    %v89 = vld [vmem:[%s3 + $0xb8] sm:$0xff]
    %v90 = vld [vmem:[%s3 + $0xc0] sm:$0xff]
    %v91 = vld [vmem:[%s3 + $0xc8] sm:$0xff]
    %v92 = vld [vmem:[%s3 + $0xd0] sm:$0xff]
    %v93 = vld [vmem:[%s3 + $0xd8] sm:$0xff]
    %v94 = vld [vmem:[%s3 + $0xe0] sm:$0xff]
    %v95 = vld [vmem:[%s3 + $0xe8] sm:$0xff]
    %v96 = vld [vmem:[%s3 + $0xf0] sm:$0xff]
    %v97 = vld [vmem:[%s3 + $0xf8] sm:$0xff]
    %99 = vset.pattern.permute.xlu0 0
    %100 = vperm.xlu0 %99, %v66
    %v101 = vpop.permute.xlu0 %100
    %104 = vset.pattern.permute.xlu0 0
    %105 = vperm.xlu0 %104, %v67
    %v106 = vpop.permute.xlu0 %105
    %109 = vset.pattern.permute.xlu0 0
    %110 = vperm.xlu0 %109, %v68
    %v111 = vpop.permute.xlu0 %110
    %114 = vset.pattern.permute.xlu0 0
    %115 = vperm.xlu0 %114, %v69
    %v116 = vpop.permute.xlu0 %115
    %119 = vset.pattern.permute.xlu0 0
    %120 = vperm.xlu0 %119, %v70
    %v121 = vpop.permute.xlu0 %120
    %124 = vset.pattern.permute.xlu0 0
    %125 = vperm.xlu0 %124, %v71
    %v126 = vpop.permute.xlu0 %125
    %129 = vset.pattern.permute.xlu0 0
    %130 = vperm.xlu0 %129, %v72
    %v131 = vpop.permute.xlu0 %130
    %134 = vset.pattern.permute.xlu0 0
    %135 = vperm.xlu0 %134, %v73
    %v136 = vpop.permute.xlu0 %135
    %139 = vset.pattern.permute.xlu0 0
    %140 = vperm.xlu0 %139, %v74
    %v141 = vpop.permute.xlu0 %140
    %144 = vset.pattern.permute.xlu0 0
    %145 = vperm.xlu0 %144, %v75
    %v146 = vpop.permute.xlu0 %145
    %149 = vset.pattern.permute.xlu0 0
    %150 = vperm.xlu0 %149, %v76
    %v151 = vpop.permute.xlu0 %150
    %154 = vset.pattern.permute.xlu0 0
    %155 = vperm.xlu0 %154, %v77
    %v156 = vpop.permute.xlu0 %155
    %159 = vset.pattern.permute.xlu0 0
    %160 = vperm.xlu0 %159, %v78
    %v161 = vpop.permute.xlu0 %160
    %164 = vset.pattern.permute.xlu0 0
    %165 = vperm.xlu0 %164, %v79
    %v166 = vpop.permute.xlu0 %165
    %169 = vset.pattern.permute.xlu0 0
    %170 = vperm.xlu0 %169, %v80
    %v171 = vpop.permute.xlu0 %170
    %174 = vset.pattern.permute.xlu0 0
    %175 = vperm.xlu0 %174, %v81
    %v176 = vpop.permute.xlu0 %175
    %179 = vset.pattern.permute.xlu0 0
    %180 = vperm.xlu0 %179, %v82
    %v181 = vpop.permute.xlu0 %180
    %184 = vset.pattern.permute.xlu0 0
    %185 = vperm.xlu0 %184, %v83
    %v186 = vpop.permute.xlu0 %185
    %189 = vset.pattern.permute.xlu0 0
    %190 = vperm.xlu0 %189, %v84
    %v191 = vpop.permute.xlu0 %190
    %194 = vset.pattern.permute.xlu0 0
    %195 = vperm.xlu0 %194, %v85
    %v196 = vpop.permute.xlu0 %195
    %199 = vset.pattern.permute.xlu0 0
    %200 = vperm.xlu0 %199, %v86
    %v201 = vpop.permute.xlu0 %200
    %204 = vset.pattern.permute.xlu0 0
    %205 = vperm.xlu0 %204, %v87
    %v206 = vpop.permute.xlu0 %205
    %209 = vset.pattern.permute.xlu0 0
    %210 = vperm.xlu0 %209, %v88
    %v211 = vpop.permute.xlu0 %210
    %214 = vset.pattern.permute.xlu0 0
    %215 = vperm.xlu0 %214, %v89
    %v216 = vpop.permute.xlu0 %215
    %219 = vset.pattern.permute.xlu0 0
    %220 = vperm.xlu0 %219, %v90
    %v221 = vpop.permute.xlu0 %220
    %224 = vset.pattern.permute.xlu0 0
    %225 = vperm.xlu0 %224, %v91
    %v226 = vpop.permute.xlu0 %225
    %229 = vset.pattern.permute.xlu0 0
    %230 = vperm.xlu0 %229, %v92
    %v231 = vpop.permute.xlu0 %230
    %234 = vset.pattern.permute.xlu0 0
    %235 = vperm.xlu0 %234, %v93
    %v236 = vpop.permute.xlu0 %235
    %239 = vset.pattern.permute.xlu0 0
    %240 = vperm.xlu0 %239, %v94
    %v241 = vpop.permute.xlu0 %240
    %244 = vset.pattern.permute.xlu0 0
    %245 = vperm.xlu0 %244, %v95
    %v246 = vpop.permute.xlu0 %245
    %249 = vset.pattern.permute.xlu0 0
    %250 = vperm.xlu0 %249, %v96
    %v251 = vpop.permute.xlu0 %250
    %254 = vset.pattern.permute.xlu0 0
    %255 = vperm.xlu0 %254, %v97
    %v256 = vpop.permute.xlu0 %255
    %v258 = vmul.f32 %v34, %v101
    %v259 = vmul.f32 %v35, %v106
    %v260 = vmul.f32 %v36, %v111
    %v261 = vmul.f32 %v37, %v116
    %v262 = vmul.f32 %v38, %v121
    %v263 = vmul.f32 %v39, %v126
    %v264 = vmul.f32 %v40, %v131
    %v265 = vmul.f32 %v41, %v136
    %v266 = vmul.f32 %v42, %v141
    %v267 = vmul.f32 %v43, %v146
    %v268 = vmul.f32 %v44, %v151
    %v269 = vmul.f32 %v45, %v156
    %v270 = vmul.f32 %v46, %v161
    %v271 = vmul.f32 %v47, %v166
    %v272 = vmul.f32 %v48, %v171
    %v273 = vmul.f32 %v49, %v176
    %v274 = vmul.f32 %v50, %v181
    %v275 = vmul.f32 %v51, %v186
    %v276 = vmul.f32 %v52, %v191
    %v277 = vmul.f32 %v53, %v196
    %v278 = vmul.f32 %v54, %v201
    %v279 = vmul.f32 %v55, %v206
    %v280 = vmul.f32 %v56, %v211
    %v281 = vmul.f32 %v57, %v216
    %v282 = vmul.f32 %v58, %v221
    %v283 = vmul.f32 %v59, %v226
    %v284 = vmul.f32 %v60, %v231
    %v285 = vmul.f32 %v61, %v236
    %v286 = vmul.f32 %v62, %v241
    %v287 = vmul.f32 %v63, %v246
    %v288 = vmul.f32 %v64, %v251
    %v289 = vmul.f32 %v65, %v256
    %vm290 = vcmask 261120
    %v292 = vsel %vm290, %v32, 0
    %v295 = vsel %vm290, %v258, 0
    %v298 = vsel %vm290, %v259, 0
    %v301 = vsel %vm290, %v260, 0
    %v304 = vsel %vm290, %v261, 0
    %v307 = vsel %vm290, %v262, 0
    %v310 = vsel %vm290, %v263, 0
    %v313 = vsel %vm290, %v264, 0
    %v316 = vsel %vm290, %v265, 0
    %v319 = vsel %vm290, %v266, 0
    %v322 = vsel %vm290, %v267, 0
    %v325 = vsel %vm290, %v268, 0
    %v328 = vsel %vm290, %v269, 0
    %v331 = vsel %vm290, %v270, 0
    %v334 = vsel %vm290, %v271, 0
    %v337 = vsel %vm290, %v272, 0
    %v340 = vsel %vm290, %v273, 0
    %342 = vmatprep.subr.mxu0 0.0
    %343 = vmatpush1.xpose.msra.mxu0 %v295
    %344 = vmatprep.subr.mxu0 0.0
    %345 = vmatpush1.xpose.msra.mxu0 %v298
    %346 = vmatprep.subr.mxu0 0.0
    %347 = vmatpush1.xpose.msra.mxu0 %v301
    %348 = vmatprep.subr.mxu0 0.0
    %349 = vmatpush1.xpose.msra.mxu0 %v304
    %350 = vmatprep.subr.mxu0 0.0
    %351 = vmatpush1.xpose.msra.mxu0 %v307
    %352 = vmatprep.subr.mxu0 0.0
    %353 = vmatpush1.xpose.msra.mxu0 %v310
    %354 = vmatprep.subr.mxu0 0.0
    %355 = vmatpush1.xpose.msra.mxu0 %v313
    %356 = vmatprep.subr.mxu0 0.0
    %357 = vmatpush1.xpose.msra.mxu0 %v316
    %358 = vmatprep.subr.mxu0 0.0
    %359 = vmatpush1.xpose.msra.mxu0 %v319
    %360 = vmatprep.subr.mxu0 0.0
    %361 = vmatpush1.xpose.msra.mxu0 %v322
    %362 = vmatprep.subr.mxu0 0.0
    %363 = vmatpush1.xpose.msra.mxu0 %v325
    %364 = vmatprep.subr.mxu0 0.0
    %365 = vmatpush1.xpose.msra.mxu0 %v328
    %366 = vmatprep.subr.mxu0 0.0
    %367 = vmatpush1.xpose.msra.mxu0 %v331
    %368 = vmatprep.subr.mxu0 0.0
    %369 = vmatpush1.xpose.msra.mxu0 %v334
    %370 = vmatprep.subr.mxu0 0.0
    %371 = vmatpush1.xpose.msra.mxu0 %v337
    %372 = vmatprep.subr.mxu0 0.0
    %373 = vmatpush1.xpose.msra.mxu0 %v340
    %374 = vmatprep.subr.mxu0 0.0
    %375 = vmatpush1.xpose.msra.mxu0 0.0
    %376 = vmatprep.subr.mxu0 0.0
    %377 = vmatpush1.xpose.msra.mxu0 0.0
    %378 = vmatprep.subr.mxu0 0.0
    %379 = vmatpush1.xpose.msra.mxu0 0.0
    %380 = vmatprep.subr.mxu0 0.0
    %381 = vmatpush1.xpose.msra.mxu0 0.0
    %382 = vmatprep.subr.mxu0 0.0
    %383 = vmatpush1.xpose.msra.mxu0 0.0
    %384 = vmatprep.subr.mxu0 0.0
    %385 = vmatpush1.xpose.msra.mxu0 0.0
    %386 = vmatprep.subr.mxu0 0.0
    %387 = vmatpush1.xpose.msra.mxu0 0.0
    %388 = vmatprep.subr.mxu0 0.0
    %389 = vmatpush1.xpose.msra.mxu0 0.0
    %390 = vmatprep.subr.mxu0 0.0
    %391 = vmatpush1.xpose.msra.mxu0 0.0
    %392 = vmatprep.subr.mxu0 0.0
    %393 = vmatpush1.xpose.msra.mxu0 0.0
    %394 = vmatprep.subr.mxu0 0.0
    %395 = vmatpush1.xpose.msra.mxu0 0.0
    %396 = vmatprep.subr.mxu0 0.0
    %397 = vmatpush1.xpose.msra.mxu0 0.0
    %398 = vmatprep.subr.mxu0 0.0
    %399 = vmatpush1.xpose.msra.mxu0 0.0
    %400 = vmatprep.subr.mxu0 0.0
    %401 = vmatpush1.xpose.msra.mxu0 0.0
    %402 = vmatprep.subr.mxu0 0.0
    %403 = vmatpush1.xpose.msra.mxu0 0.0
    %404 = vmatprep.subr.mxu0 0.0
    %405 = vmatpush1.xpose.msra.mxu0 0.0
    %406 = vmatprep.mubr.f32.mxu0 0.0
    %407 = vmatmul.mubr.f32.gmra.mrb[0].mxu0 %v292
    %v408 = vpop.f32.mrb[0].mxu0
    %v409 = vadd.f32 0.0, %v408
    %v410 = vpop.f32.mrb[0].mxu0
    %411 = vdwg.mxu0
    %v413 = vsel %vm290, %v33, 0
    %v416 = vsel %vm290, %v274, 0
    %v419 = vsel %vm290, %v275, 0
    %v422 = vsel %vm290, %v276, 0
    %v425 = vsel %vm290, %v277, 0
    %v428 = vsel %vm290, %v278, 0
    %v431 = vsel %vm290, %v279, 0
    %v434 = vsel %vm290, %v280, 0
    %v437 = vsel %vm290, %v281, 0
    %v440 = vsel %vm290, %v282, 0
    %v443 = vsel %vm290, %v283, 0
    %v446 = vsel %vm290, %v284, 0
    %v449 = vsel %vm290, %v285, 0
    %v452 = vsel %vm290, %v286, 0
    %v455 = vsel %vm290, %v287, 0
    %v458 = vsel %vm290, %v288, 0
    %v461 = vsel %vm290, %v289, 0
    %463 = vmatprep.subr.mxu0 0.0
    %464 = vmatpush1.xpose.msra.mxu0 %v416
    %465 = vmatprep.subr.mxu0 0.0
    %466 = vmatpush1.xpose.msra.mxu0 %v419
    %467 = vmatprep.subr.mxu0 0.0
    %468 = vmatpush1.xpose.msra.mxu0 %v422
    %469 = vmatprep.subr.mxu0 0.0
    %470 = vmatpush1.xpose.msra.mxu0 %v425
    %471 = vmatprep.subr.mxu0 0.0
    %472 = vmatpush1.xpose.msra.mxu0 %v428
    %473 = vmatprep.subr.mxu0 0.0
    %474 = vmatpush1.xpose.msra.mxu0 %v431
    %475 = vmatprep.subr.mxu0 0.0
    %476 = vmatpush1.xpose.msra.mxu0 %v434
    %477 = vmatprep.subr.mxu0 0.0
    %478 = vmatpush1.xpose.msra.mxu0 %v437
    %479 = vmatprep.subr.mxu0 0.0
    %480 = vmatpush1.xpose.msra.mxu0 %v440
    %481 = vmatprep.subr.mxu0 0.0
    %482 = vmatpush1.xpose.msra.mxu0 %v443
    %483 = vmatprep.subr.mxu0 0.0
    %484 = vmatpush1.xpose.msra.mxu0 %v446
    %485 = vmatprep.subr.mxu0 0.0
    %486 = vmatpush1.xpose.msra.mxu0 %v449
    %487 = vmatprep.subr.mxu0 0.0
    %488 = vmatpush1.xpose.msra.mxu0 %v452
    %489 = vmatprep.subr.mxu0 0.0
    %490 = vmatpush1.xpose.msra.mxu0 %v455
    %491 = vmatprep.subr.mxu0 0.0
    %492 = vmatpush1.xpose.msra.mxu0 %v458
    %493 = vmatprep.subr.mxu0 0.0
    %494 = vmatpush1.xpose.msra.mxu0 %v461
    %495 = vmatprep.subr.mxu0 0.0
    %496 = vmatpush1.xpose.msra.mxu0 0.0
    %497 = vmatprep.subr.mxu0 0.0
    %498 = vmatpush1.xpose.msra.mxu0 0.0
    %499 = vmatprep.subr.mxu0 0.0
    %500 = vmatpush1.xpose.msra.mxu0 0.0
    %501 = vmatprep.subr.mxu0 0.0
    %502 = vmatpush1.xpose.msra.mxu0 0.0
    %503 = vmatprep.subr.mxu0 0.0
    %504 = vmatpush1.xpose.msra.mxu0 0.0
    %505 = vmatprep.subr.mxu0 0.0
    %506 = vmatpush1.xpose.msra.mxu0 0.0
    %507 = vmatprep.subr.mxu0 0.0
    %508 = vmatpush1.xpose.msra.mxu0 0.0
    %509 = vmatprep.subr.mxu0 0.0
    %510 = vmatpush1.xpose.msra.mxu0 0.0
    %511 = vmatprep.subr.mxu0 0.0
    %512 = vmatpush1.xpose.msra.mxu0 0.0
    %513 = vmatprep.subr.mxu0 0.0
    %514 = vmatpush1.xpose.msra.mxu0 0.0
    %515 = vmatprep.subr.mxu0 0.0
    %516 = vmatpush1.xpose.msra.mxu0 0.0
    %517 = vmatprep.subr.mxu0 0.0
    %518 = vmatpush1.xpose.msra.mxu0 0.0
    %519 = vmatprep.subr.mxu0 0.0
    %520 = vmatpush1.xpose.msra.mxu0 0.0
    %521 = vmatprep.subr.mxu0 0.0
    %522 = vmatpush1.xpose.msra.mxu0 0.0
    %523 = vmatprep.subr.mxu0 0.0
    %524 = vmatpush1.xpose.msra.mxu0 0.0
    %525 = vmatprep.subr.mxu0 0.0
    %526 = vmatpush1.xpose.msra.mxu0 0.0
    %527 = vmatprep.mubr.f32.mxu0 0.0
    %528 = vmatmul.mubr.f32.gmra.mrb[0].mxu0 %v413
    %v529 = vpop.f32.mrb[0].mxu0
    %v530 = vadd.f32 0.0, %v529
    %v531 = vpop.f32.mrb[0].mxu0
    %532 = vdwg.mxu0
    %v533 = vmul.f32 %v32, %v32
    %v534 = vmul.f32 %v33, %v33
    %v535 = vsel %vm290, %v533, 0.0
    %536 = vadd.xlane.f32.xlu0 %v535
    %v537 = vpop.xlane.xlu0 %536
    %v538 = vsel %vm290, %v534, 0.0
    %539 = vadd.xlane.f32.xlu0 %v538
    %v540 = vpop.xlane.xlu0 %539
    %v541 = vmul.f32 %v258, %v258
    %v542 = vmul.f32 %v259, %v259
    %v543 = vmul.f32 %v260, %v260
    %v544 = vmul.f32 %v261, %v261
    %v545 = vmul.f32 %v262, %v262
    %v546 = vmul.f32 %v263, %v263
    %v547 = vmul.f32 %v264, %v264
    %v548 = vmul.f32 %v265, %v265
    %v549 = vmul.f32 %v266, %v266
    %v550 = vmul.f32 %v267, %v267
    %v551 = vmul.f32 %v268, %v268
    %v552 = vmul.f32 %v269, %v269
    %v553 = vmul.f32 %v270, %v270
    %v554 = vmul.f32 %v271, %v271
    %v555 = vmul.f32 %v272, %v272
    %v556 = vmul.f32 %v273, %v273
    %v557 = vmul.f32 %v274, %v274
    %v558 = vmul.f32 %v275, %v275
    %v559 = vmul.f32 %v276, %v276
    %v560 = vmul.f32 %v277, %v277
    %v561 = vmul.f32 %v278, %v278
    %v562 = vmul.f32 %v279, %v279
    %v563 = vmul.f32 %v280, %v280
    %v564 = vmul.f32 %v281, %v281
    %v565 = vmul.f32 %v282, %v282
    %v566 = vmul.f32 %v283, %v283
    %v567 = vmul.f32 %v284, %v284
    %v568 = vmul.f32 %v285, %v285
    %v569 = vmul.f32 %v286, %v286
    %v570 = vmul.f32 %v287, %v287
    %v571 = vmul.f32 %v288, %v288
    %v572 = vmul.f32 %v289, %v289
    %v573 = vsel %vm290, %v541, 0.0
    %574 = vadd.xlane.f32.xlu0 %v573
    %v575 = vpop.xlane.xlu0 %574
    %v576 = vsel %vm290, %v542, 0.0
    %577 = vadd.xlane.f32.xlu0 %v576
    %v578 = vpop.xlane.xlu0 %577
    %v579 = vsel %vm290, %v543, 0.0
    %580 = vadd.xlane.f32.xlu0 %v579
    %v581 = vpop.xlane.xlu0 %580
    %v582 = vsel %vm290, %v544, 0.0
    %583 = vadd.xlane.f32.xlu0 %v582
    %v584 = vpop.xlane.xlu0 %583
    %v585 = vsel %vm290, %v545, 0.0
    %586 = vadd.xlane.f32.xlu0 %v585
    %v587 = vpop.xlane.xlu0 %586
    %v588 = vsel %vm290, %v546, 0.0
    %589 = vadd.xlane.f32.xlu0 %v588
    %v590 = vpop.xlane.xlu0 %589
    %v591 = vsel %vm290, %v547, 0.0
    %592 = vadd.xlane.f32.xlu0 %v591
    %v593 = vpop.xlane.xlu0 %592
    %v594 = vsel %vm290, %v548, 0.0
    %595 = vadd.xlane.f32.xlu0 %v594
    %v596 = vpop.xlane.xlu0 %595
    %v597 = vsel %vm290, %v549, 0.0
    %598 = vadd.xlane.f32.xlu0 %v597
    %v599 = vpop.xlane.xlu0 %598
    %v600 = vsel %vm290, %v550, 0.0
    %601 = vadd.xlane.f32.xlu0 %v600
    %v602 = vpop.xlane.xlu0 %601
    %v603 = vsel %vm290, %v551, 0.0
    %604 = vadd.xlane.f32.xlu0 %v603
    %v605 = vpop.xlane.xlu0 %604
    %v606 = vsel %vm290, %v552, 0.0
    %607 = vadd.xlane.f32.xlu0 %v606
    %v608 = vpop.xlane.xlu0 %607
    %v609 = vsel %vm290, %v553, 0.0
    %610 = vadd.xlane.f32.xlu0 %v609
    %v611 = vpop.xlane.xlu0 %610
    %v612 = vsel %vm290, %v554, 0.0
    %613 = vadd.xlane.f32.xlu0 %v612
    %v614 = vpop.xlane.xlu0 %613
    %v615 = vsel %vm290, %v555, 0.0
    %616 = vadd.xlane.f32.xlu0 %v615
    %v617 = vpop.xlane.xlu0 %616
    %v618 = vsel %vm290, %v556, 0.0
    %619 = vadd.xlane.f32.xlu0 %v618
    %v620 = vpop.xlane.xlu0 %619
    %v621 = vsel %vm290, %v557, 0.0
    %622 = vadd.xlane.f32.xlu0 %v621
    %v623 = vpop.xlane.xlu0 %622
    %v624 = vsel %vm290, %v558, 0.0
    %625 = vadd.xlane.f32.xlu0 %v624
    %v626 = vpop.xlane.xlu0 %625
    %v627 = vsel %vm290, %v559, 0.0
    %628 = vadd.xlane.f32.xlu0 %v627
    %v629 = vpop.xlane.xlu0 %628
    %v630 = vsel %vm290, %v560, 0.0
    %631 = vadd.xlane.f32.xlu0 %v630
    %v632 = vpop.xlane.xlu0 %631
    %v633 = vsel %vm290, %v561, 0.0
    %634 = vadd.xlane.f32.xlu0 %v633
    %v635 = vpop.xlane.xlu0 %634
    %v636 = vsel %vm290, %v562, 0.0
    %637 = vadd.xlane.f32.xlu0 %v636
    %v638 = vpop.xlane.xlu0 %637
    %v639 = vsel %vm290, %v563, 0.0
    %640 = vadd.xlane.f32.xlu0 %v639
    %v641 = vpop.xlane.xlu0 %640
    %v642 = vsel %vm290, %v564, 0.0
    %643 = vadd.xlane.f32.xlu0 %v642
    %v644 = vpop.xlane.xlu0 %643
    %v645 = vsel %vm290, %v565, 0.0
    %646 = vadd.xlane.f32.xlu0 %v645
    %v647 = vpop.xlane.xlu0 %646
    %v648 = vsel %vm290, %v566, 0.0
    %649 = vadd.xlane.f32.xlu0 %v648
    %v650 = vpop.xlane.xlu0 %649
    %v651 = vsel %vm290, %v567, 0.0
    %652 = vadd.xlane.f32.xlu0 %v651
    %v653 = vpop.xlane.xlu0 %652
    %v654 = vsel %vm290, %v568, 0.0
    %655 = vadd.xlane.f32.xlu0 %v654
    %v656 = vpop.xlane.xlu0 %655
    %v657 = vsel %vm290, %v569, 0.0
    %658 = vadd.xlane.f32.xlu0 %v657
    %v659 = vpop.xlane.xlu0 %658
    %v660 = vsel %vm290, %v570, 0.0
    %661 = vadd.xlane.f32.xlu0 %v660
    %v662 = vpop.xlane.xlu0 %661
    %v663 = vsel %vm290, %v571, 0.0
    %664 = vadd.xlane.f32.xlu0 %v663
    %v665 = vpop.xlane.xlu0 %664
    %v666 = vsel %vm290, %v572, 0.0
    %667 = vadd.xlane.f32.xlu0 %v666
    %v668 = vpop.xlane.xlu0 %667
    %669 = vxpose.xlu0.b32.start [1/16] %v575, 128
    %670 = vxpose.xlu0.b32.cont [2/16] %v578, 128
    %671 = vxpose.xlu0.b32.cont [3/16] %v581, 128
    %672 = vxpose.xlu0.b32.cont [4/16] %v584, 128
    %673 = vxpose.xlu0.b32.cont [5/16] %v587, 128
    %674 = vxpose.xlu0.b32.cont [6/16] %v590, 128
    %675 = vxpose.xlu0.b32.cont [7/16] %v593, 128
    %676 = vxpose.xlu0.b32.cont [8/16] %v596, 128
    %677 = vxpose.xlu0.b32.cont [9/16] %v599, 128
    %678 = vxpose.xlu0.b32.cont [10/16] %v602, 128
    %679 = vxpose.xlu0.b32.cont [11/16] %v605, 128
    %680 = vxpose.xlu0.b32.cont [12/16] %v608, 128
    %681 = vxpose.xlu0.b32.cont [13/16] %v611, 128
    %682 = vxpose.xlu0.b32.cont [14/16] %v614, 128
    %683 = vxpose.xlu0.b32.cont [15/16] %v617, 128
    %684 = vxpose.xlu0.b32.end [16/16] %v620, 128
    %v685 = vpop.trf.xlu0
    %v686 = vpop.trf.xlu0
    %v687 = vpop.trf.xlu0
    %v688 = vpop.trf.xlu0
    %v689 = vpop.trf.xlu0
    %v690 = vpop.trf.xlu0
    %v691 = vpop.trf.xlu0
    %v692 = vpop.trf.xlu0
    %v693 = vpop.trf.xlu0
    %v694 = vpop.trf.xlu0
    %v695 = vpop.trf.xlu0
    %v696 = vpop.trf.xlu0
    %v697 = vpop.trf.xlu0
    %v698 = vpop.trf.xlu0
    %v699 = vpop.trf.xlu0
    %v700 = vpop.trf.xlu0
    %701 = vxpose.xlu0.b32.start [1/16] %v623, 128
    %702 = vxpose.xlu0.b32.cont [2/16] %v626, 128
    %703 = vxpose.xlu0.b32.cont [3/16] %v629, 128
    %704 = vxpose.xlu0.b32.cont [4/16] %v632, 128
    %705 = vxpose.xlu0.b32.cont [5/16] %v635, 128
    %706 = vxpose.xlu0.b32.cont [6/16] %v638, 128
    %707 = vxpose.xlu0.b32.cont [7/16] %v641, 128
    %708 = vxpose.xlu0.b32.cont [8/16] %v644, 128
    %709 = vxpose.xlu0.b32.cont [9/16] %v647, 128
    %710 = vxpose.xlu0.b32.cont [10/16] %v650, 128
    %711 = vxpose.xlu0.b32.cont [11/16] %v653, 128
    %712 = vxpose.xlu0.b32.cont [12/16] %v656, 128
    %713 = vxpose.xlu0.b32.cont [13/16] %v659, 128
    %714 = vxpose.xlu0.b32.cont [14/16] %v662, 128
    %715 = vxpose.xlu0.b32.cont [15/16] %v665, 128
    %716 = vxpose.xlu0.b32.end [16/16] %v668, 128
    %v717 = vpop.trf.xlu0
    %v718 = vpop.trf.xlu0
    %v719 = vpop.trf.xlu0
    %v720 = vpop.trf.xlu0
    %v721 = vpop.trf.xlu0
    %v722 = vpop.trf.xlu0
    %v723 = vpop.trf.xlu0
    %v724 = vpop.trf.xlu0
    %v725 = vpop.trf.xlu0
    %v726 = vpop.trf.xlu0
    %v727 = vpop.trf.xlu0
    %v728 = vpop.trf.xlu0
    %v729 = vpop.trf.xlu0
    %v730 = vpop.trf.xlu0
    %v731 = vpop.trf.xlu0
    %v732 = vpop.trf.xlu0
    %v733 = vlaneseq
    %v734 = vshrl.u32 %v733, 7
    %v735 = vsub.s32 0, %v734
    %v736 = vrot.slane %v685, %v735
    %v737 = vlaneseq
    %v738 = vshrl.u32 %v737, 7
    %v739 = vsub.s32 0, %v738
    %v740 = vrot.slane %v717, %v739
    %v741 = vmul.f32 %v537, %v736
    %v742 = vmul.f32 %v540, %v740
    %v743 = vmax.f32 %v741, 1e-16
    %v744 = vmax.f32 %v742, 1e-16
    %v745 = vrsqrt.pop %v743
    %v746 = vrsqrt.pop %v744
    %v747 = vmul.f32 %v409, %v745
    %v748 = vmul.f32 %v530, %v746
    %749 = vst [vmem:[#allocation2] sm:$0xff] %v747
    %750 = vst [vmem:[#allocation2 + $0x8] sm:$0xff] %v748
    // Predicated region
    $region18: #{tpu_custom_call.1} parent=1 // pred_check
      _
    $region19: #{tpu_custom_call.1} parent=1 // pred_check_branch
      %752 = sbr.rel (0) target = $region21
    $region20: #{tpu_custom_call.1} parent=1 // pred_region
      %s754 = ssub.s32 256, 256
      %755 = vsyncadd [#allocation3], %s754
      %s756 = sshll.u32 [#allocation2], 4
      %s757 = int_to_ptr.vmem [resolvable:$true] %s756
      %762 = dma.vmem_to_hbm [thread:$0]  %s757, 256, %s4, [#allocation3], 128, 128, 8
    $region21: #{tpu_custom_call.1} parent=1 // pred_fallthru
      _
    // Predicated region
    $region22: #{tpu_custom_call.1} parent=1 // pred_check
      _
    $region23: #{tpu_custom_call.1} parent=1 // pred_check_branch
      %764 = sbr.rel (0) target = $region25
    $region24: #{tpu_custom_call.1} parent=1 // pred_region
      %765 = dma.done [#allocation3], 256
    $region25: #{tpu_custom_call.1} parent=1 // pred_fallthru
      _
    %766 = vsyncpa [#allocation3], 1

</llo_original>
